<compile_context>
chip_gen: v7x
topology: tpu7x:2x2x1
jax: 0.10.0
libtpu: 0.0.40
codegen_flags: <defaults>
</compile_context>

<pallas_src>
import functools

import jax
import jax.numpy as jnp
from jax import lax
from jax.experimental import pallas as pl
from jax.experimental.pallas import tpu as pltpu


def _round_up(a, m):
    return ((a + m - 1) // m) * m


def _generator_loss_kernel(x_ref, w1_ref, b1_ref, w2_ref, b2_ref, partial_ref,
                           *, n_rows, tile_m):
    # x:  [TM, D]   streamed (f32/bf16), cast to bf16 in-body for the MXU
    # w1: [D, Hp]   bf16, resident      b1: [1, Hp] f32, resident
    # w2: [1, Hp]   f32,  resident      b2: [1, 1]  f32, SMEM scalar
    # partial: [8, 128] f32 — one independent lane-dense block per grid step.
    i = pl.program_id(0)

    # Hidden layer on the MXU: bf16 x bf16 with f32 accumulation.  The bf16
    # cast happens here (not in the XLA wrapper) so x is read from HBM once.
    x = x_ref[...].astype(jnp.bfloat16)
    h = jnp.dot(x, w1_ref[...], preferred_element_type=jnp.float32)
    h = h + b1_ref[...]
    h = jnp.where(h > 0, h, 0.2 * h)                                  # LeakyReLU(0.2)

    # Output head [TM,Hp] @ [Hp,1] as VPU multiply + lane (XLU) reduction:
    # avoids a K=32 / N=1 MXU push and a 1-wide masked store.
    logits = jnp.sum(h * w2_ref[...], axis=1, keepdims=True) + b2_ref[0, 0]

    # BCE-with-logits vs. target==1  ==  softplus(-z), numerically stable:
    #   softplus(-z) = max(-z, 0) + log1p(exp(-|z|))
    z = logits
    per_row = jnp.maximum(-z, 0.0) + jnp.log1p(jnp.exp(-jnp.abs(z)))  # [TM,1]

    # Mask rows past the true batch size (ragged last tile reads stale VMEM).
    row = lax.broadcasted_iota(jnp.int32, per_row.shape, 0) + i * tile_m
    per_row = jnp.where(row < n_rows, per_row, 0.0)

    partial = jnp.sum(per_row, axis=0, keepdims=True)                 # [1,1]
    partial_ref[...] = jnp.broadcast_to(partial, partial_ref.shape)   # [8,128]


def generator_loss(fake_images, w1, b1, w2, b2, *,
                   x_tile_budget_bytes=4 * 1024 * 1024):
    """fake_images: [N, C, H, W]; w1: [D, HID]; b1: [1, HID]; w2: [HID, 1];
    b2: [1, 1].  Returns the scalar f32 generator loss."""
    N = fake_images.shape[0]
    D, HID = w1.shape

    H_pad = _round_up(max(HID, 128), 128)

    # ---- x: flatten only (same row-major ordering as torch .view).  No cast,
    # no pad: the bf16 cast happens in-kernel; the last-dim block uses the full
    # D extent; the ragged batch tail is handled by the in-kernel row mask. ----
    x = fake_images.reshape(N, D)
    x_item = jnp.dtype(x.dtype).itemsize

    # Batch tile: largest multiple of 8 whose block fits the per-buffer budget
    # (the pipeline double-buffers it), capped at 1024 to amortize the
    # ~0.35 us per-grid-step overhead on v6e/v7x.
    tm = max(8, min(1024, x_tile_budget_bytes // (D * x_item)))
    tm = (tm // 8) * 8
    n_min = _round_up(N, 8)
    if tm > n_min:
        tm = n_min
    num_tiles = -(-N // tm)            # cdiv; last tile may be ragged (masked)

    # ---- Weights: pad hidden dim to the 128-lane width; w1 resident in bf16.
    # TODO(synk): for very large D (full-res images, D ~ 200K) w1 no longer
    # fits VMEM-resident (worst on v7x's 64 MiB); add a K-grid axis with an
    # f32 hidden accumulator instead of the fully-resident w1 below. ----
    w1_p = jnp.pad(w1.astype(jnp.bfloat16), ((0, 0), (0, H_pad - HID)))
    b1_p = jnp.pad(jnp.asarray(b1, jnp.float32).reshape(1, HID),
                   ((0, 0), (0, H_pad - HID)))
    w2_row = jnp.pad(jnp.asarray(w2, jnp.float32).reshape(HID, 1).T,
                     ((0, 0), (0, H_pad - HID)))                  # [1, H_pad]
    b2_p = jnp.asarray(b2, jnp.float32).reshape(1, 1)

    # VMEM budget from actual buffer sizes (x tile and w1 are double-buffered
    # by the BlockSpec pipeline), capped at 64 MiB so it is v7x-safe.
    vmem_needed = (2 * tm * D * x_item          # x tile, double-buffered
                   + 2 * D * H_pad * 2          # w1 (bf16), double-buffered
                   + 4 * 2 * H_pad * 4          # b1 / w2 rows
                   + 2 * 8 * 128 * 4            # partial output blocks
                   + 4 * tm * H_pad * 4)        # h / head intermediates slack
    vmem_limit = int(min(64 * 1024 * 1024,
                         max(32 * 1024 * 1024, vmem_needed * 5 // 4)))

    cost = pl.CostEstimate(
        flops=2 * N * D * H_pad + 6 * N * H_pad,
        transcendentals=2 * N,
        bytes_accessed=N * D * x_item + D * H_pad * 2 + num_tiles * 8 * 128 * 4,
    )

    kernel = functools.partial(_generator_loss_kernel, n_rows=N, tile_m=tm)

    partials = pl.pallas_call(
        kernel,
        out_shape=jax.ShapeDtypeStruct((num_tiles * 8, 128), jnp.float32),
        grid=(num_tiles,),
        in_specs=[
            pl.BlockSpec((tm, D), lambda i: (i, 0)),             # x: streamed
            pl.BlockSpec((D, H_pad), lambda i: (0, 0)),          # w1: resident
            pl.BlockSpec((1, H_pad), lambda i: (0, 0)),          # b1: resident
            pl.BlockSpec((1, H_pad), lambda i: (0, 0)),          # w2 row: resident
            pl.BlockSpec(memory_space=pltpu.MemorySpace.SMEM),   # b2: scalar
        ],
        out_specs=pl.BlockSpec((8, 128), lambda i: (i, 0)),      # per-tile partial
        compiler_params=pltpu.CompilerParams(
            dimension_semantics=("parallel",),   # independent tiles -> megacore
            vmem_limit_bytes=vmem_limit,
        ),
        cost_estimate=cost,
    )(x, w1_p, b1_p, w2_row, b2_p)

    # Tiny final reduction (one partial per tile) + 1/N scale, done in XLA.
    return jnp.sum(partials[0::8, 0]) * (1.0 / N)


def _reference_loss(fake_images, w1, b1, w2, b2):
    # Mirrors the kernel's mixed precision (bf16 matmul inputs, f32 accum).
    # NOTE: vs. true f32 PyTorch BCE-with-logits this can differ ~1e-3 rel.
    N = fake_images.shape[0]
    x = fake_images.reshape(N, -1).astype(jnp.bfloat16)
    h = jnp.dot(x, w1.astype(jnp.bfloat16), preferred_element_type=jnp.float32)
    h = h + jnp.asarray(b1, jnp.float32).reshape(1, -1)
    h = jnp.where(h > 0, h, 0.2 * h)
    z = jnp.dot(h, jnp.asarray(w2, jnp.float32),
                preferred_element_type=jnp.float32)
    z = z + jnp.asarray(b2, jnp.float32).reshape(1, 1)
    return jnp.mean(jnp.maximum(-z, 0.0) + jnp.log1p(jnp.exp(-jnp.abs(z))))


if __name__ == "__main__":
    # Small shapes consistent with the module: batch=2, channels=4, spatial=16.
    N, C, H, W = 2, 4, 16, 16
    HIDDEN = 32
    D = C * H * W  # 1024

    key = jax.random.PRNGKey(0)
    k_img, k_w1, k_b1, k_w2, k_b2 = jax.random.split(key, 5)

    fake_images = jax.random.normal(k_img, (N, C, H, W), dtype=jnp.float32)

    # Deterministic synthetic discriminator parameters.
    w1 = jax.random.normal(k_w1, (D, HIDDEN), dtype=jnp.float32) * (1.0 / jnp.sqrt(D))
    b1 = jax.random.normal(k_b1, (1, HIDDEN), dtype=jnp.float32) * 0.01
    w2 = jax.random.normal(k_w2, (HIDDEN, 1), dtype=jnp.float32) * (1.0 / jnp.sqrt(HIDDEN))
    b2 = jax.random.normal(k_b2, (1, 1), dtype=jnp.float32) * 0.01

    loss = generator_loss(fake_images, w1, b1, w2, b2)
    jax.block_until_ready(loss)

    ref = _reference_loss(fake_images, w1, b1, w2, b2)
    assert jnp.allclose(loss, ref, rtol=1e-4, atol=1e-5), (loss, ref)

    print("KERNEL_OK")
</pallas_src>

<mosaic_0001>
module attributes {stable_mosaic.version = 11 : i64} {
  func.func @_generator_loss_kernel(%arg0: i32, %arg1: memref<8x1024xf32, #tpu.memory_space<vmem>>, %arg2: memref<1024x128xbf16, #tpu.memory_space<vmem>>, %arg3: memref<1x128xf32, #tpu.memory_space<vmem>>, %arg4: memref<1x128xf32, #tpu.memory_space<vmem>>, %arg5: memref<1x1xf32, #tpu.memory_space<smem>>, %arg6: memref<8x128xf32, #tpu.memory_space<vmem>>) attributes {dimension_semantics = [#tpu.dimension_semantics<parallel>], iteration_bounds = array<i64: 1>, scalar_prefetch = 0 : i64, scratch_operands = 0 : i64, tpu.core_type = #tpu.core_type<tc>, window_params = [{transform_indices = @transform_0, window_bounds = array<i64: 8, 1024>}, {pipeline_mode = #tpu.pipeline_mode<synchronous>, transform_indices = @transform_1, window_bounds = array<i64: 1024, 128>}, {pipeline_mode = #tpu.pipeline_mode<synchronous>, transform_indices = @transform_2, window_bounds = array<i64: 1, 128>}, {pipeline_mode = #tpu.pipeline_mode<synchronous>, transform_indices = @transform_3, window_bounds = array<i64: 1, 128>}, {transform_indices = @transform_4, window_bounds = array<i64: 1, 1>}, {transform_indices = @transform_5, window_bounds = array<i64: 8, 128>}]} {
    %c0 = arith.constant 0 : index
    %c0_0 = arith.constant 0 : index
    %0 = vector.load %arg1[%c0, %c0_0] : memref<8x1024xf32, #tpu.memory_space<vmem>>, vector<8x1024xf32>
    %1 = arith.truncf %0 : vector<8x1024xf32> to vector<8x1024xbf16>
    %c0_1 = arith.constant 0 : index
    %c0_2 = arith.constant 0 : index
    %2 = vector.load %arg2[%c0_1, %c0_2] : memref<1024x128xbf16, #tpu.memory_space<vmem>>, vector<1024x128xbf16>
    %cst = arith.constant dense<0.000000e+00> : vector<8x128xf32>
    %3 = tpu.matmul %1, %2, %cst {dimension_numbers = #tpu.dot_dimension_numbers<[1], [0], [0], [1], [0, 0, 1, 1], [], []>} : vector<8x1024xbf16>, vector<1024x128xbf16>, vector<8x128xf32> -> vector<8x128xf32>
    %c0_3 = arith.constant 0 : index
    %c0_4 = arith.constant 0 : index
    %4 = vector.load %arg3[%c0_3, %c0_4] : memref<1x128xf32, #tpu.memory_space<vmem>>, vector<1x128xf32>
    %5 = vector.broadcast %4 : vector<1x128xf32> to vector<8x128xf32>
    %6 = arith.addf %3, %5 : vector<8x128xf32>
    %cst_5 = arith.constant 0.000000e+00 : f32
    %7 = vector.broadcast %cst_5 : f32 to vector<8x128xf32>
    %8 = arith.cmpf ogt, %6, %7 : vector<8x128xf32>
    %cst_6 = arith.constant 2.000000e-01 : f32
    %9 = vector.broadcast %cst_6 : f32 to vector<8x128xf32>
    %10 = arith.mulf %9, %6 : vector<8x128xf32>
    %11 = arith.select %8, %6, %10 : vector<8x128xi1>, vector<8x128xf32>
    %c0_7 = arith.constant 0 : index
    %c0_8 = arith.constant 0 : index
    %12 = vector.load %arg4[%c0_7, %c0_8] : memref<1x128xf32, #tpu.memory_space<vmem>>, vector<1x128xf32>
    %13 = vector.broadcast %12 : vector<1x128xf32> to vector<8x128xf32>
    %14 = arith.mulf %11, %13 : vector<8x128xf32>
    %cst_9 = arith.constant dense<0.000000e+00> : vector<8xf32>
    %15 = vector.multi_reduction <add>, %14, %cst_9 [1] : vector<8x128xf32> to vector<8xf32>
    %16 = vector.shape_cast %15 : vector<8xf32> to vector<8x1xf32>
    %c0_10 = arith.constant 0 : index
    %c0_11 = arith.constant 0 : index
    %17 = memref.load %arg5[%c0_10, %c0_11] : memref<1x1xf32, #tpu.memory_space<smem>>
    %18 = vector.broadcast %17 : f32 to vector<8x1xf32>
    %19 = arith.addf %16, %18 : vector<8x1xf32>
    %cst_12 = arith.constant 0.000000e+00 : f32
    %20 = vector.broadcast %cst_12 : f32 to vector<8x1xf32>
    %21 = arith.subf %20, %19 : vector<8x1xf32>
    %cst_13 = arith.constant 0.000000e+00 : f32
    %22 = vector.broadcast %cst_13 : f32 to vector<8x1xf32>
    %23 = arith.maximumf %21, %22 : vector<8x1xf32>
    %24 = math.absf %19 : vector<8x1xf32>
    %cst_14 = arith.constant 0.000000e+00 : f32
    %25 = vector.broadcast %cst_14 : f32 to vector<8x1xf32>
    %26 = arith.subf %25, %24 : vector<8x1xf32>
    %27 = math.exp %26 : vector<8x1xf32>
    %28 = math.log1p %27 : vector<8x1xf32>
    %29 = arith.addf %23, %28 : vector<8x1xf32>
    %30 = tpu.iota {dimensions = array<i32: 0>} : vector<8x1xi32>
    %c8_i32 = arith.constant 8 : i32
    %31 = arith.muli %arg0, %c8_i32 : i32
    %32 = vector.broadcast %31 : i32 to vector<8x1xi32>
    %33 = arith.addi %30, %32 : vector<8x1xi32>
    %c2_i32 = arith.constant 2 : i32
    %34 = vector.broadcast %c2_i32 : i32 to vector<8x1xi32>
    %35 = arith.cmpi slt, %33, %34 : vector<8x1xi32>
    %cst_15 = arith.constant 0.000000e+00 : f32
    %36 = vector.broadcast %cst_15 : f32 to vector<8x1xf32>
    %37 = arith.select %35, %29, %36 : vector<8x1xi1>, vector<8x1xf32>
    %cst_16 = arith.constant dense<0.000000e+00> : vector<1xf32>
    %38 = vector.multi_reduction <add>, %37, %cst_16 [0] : vector<8x1xf32> to vector<1xf32>
    %39 = vector.shape_cast %38 : vector<1xf32> to vector<1x1xf32>
    %40 = vector.shape_cast %39 : vector<1x1xf32> to vector<1x1xf32>
    %41 = vector.broadcast %40 : vector<1x1xf32> to vector<8x128xf32>
    %c0_17 = arith.constant 0 : index
    %c0_18 = arith.constant 0 : index
    %42 = vector.load %arg6[%c0_17, %c0_18] : memref<8x128xf32, #tpu.memory_space<vmem>>, vector<8x128xf32>
    tpu.vector_store %arg6[%c0_17, %c0_18], %41 {strides = array<i32>} : memref<8x128xf32, #tpu.memory_space<vmem>>, vector<8x128xf32>,
    return
  }
  func.func @transform_0(%arg0: i32) -> (i32, i32) {
    %c0_i32 = arith.constant 0 : i32
    %c0_i32_0 = arith.constant 0 : i32
    return %arg0, %c0_i32 : i32, i32
  }
  func.func @transform_1(%arg0: i32) -> (i32, i32) {
    %c0_i32 = arith.constant 0 : i32
    %c0_i32_0 = arith.constant 0 : i32
    %c0_i32_1 = arith.constant 0 : i32
    return %c0_i32, %c0_i32_0 : i32, i32
  }
  func.func @transform_2(%arg0: i32) -> (i32, i32) {
    %c0_i32 = arith.constant 0 : i32
    %c0_i32_0 = arith.constant 0 : i32
    %c0_i32_1 = arith.constant 0 : i32
    return %c0_i32, %c0_i32_0 : i32, i32
  }
  func.func @transform_3(%arg0: i32) -> (i32, i32) {
    %c0_i32 = arith.constant 0 : i32
    %c0_i32_0 = arith.constant 0 : i32
    %c0_i32_1 = arith.constant 0 : i32
    return %c0_i32, %c0_i32_0 : i32, i32
  }
  func.func @transform_4(%arg0: i32) -> (i32, i32) {
    %c0_i32 = arith.constant 0 : i32
    %c0_i32_0 = arith.constant 0 : i32
    %c0_i32_1 = arith.constant 0 : i32
    return %c0_i32, %c0_i32_0 : i32, i32
  }
  func.func @transform_5(%arg0: i32) -> (i32, i32) {
    %c0_i32 = arith.constant 0 : i32
    %c0_i32_0 = arith.constant 0 : i32
    return %arg0, %c0_i32 : i32, i32
  }
}

</mosaic_0001>

<llo_original>
// kernel: tpu_custom_call.1
$region0: #{tpu_custom_call.1}
  #allocation0 [shape = 'u32[]', space=smem, size = 0x4, offset = 0x4, fixed_abs, tag = 'smem constant byte address 0x4 - core index']
  #allocation1 [shape = 'u32[144,128]{1,0:T(1,128)}', space=vmem, size = 0x12000, scoped, tag = 'internal scratch']
  #allocation2 [shape = 'f32[1,1]{1,0:T(1,128)S(6)}', space=smem, size = 0x200, scoped, tag = 'scoped memory for tpu_custom_call.1']
  %s0 = inlined_call_operand.hbm [shape: f32[2,1024], index: 0, kind: input, shape index: {}]
  %s1 = inlined_call_operand.hbm [shape: bf16[1024,128], index: 1, kind: input, shape index: {}]
  %s2 = inlined_call_operand.vmem [shape: f32[1,128], index: 2, kind: input, shape index: {}]
  %s3 = inlined_call_operand.vmem [shape: f32[1,128], index: 3, kind: input, shape index: {}]
  %s4 = inlined_call_operand.<no memory space> [shape: f32[1,1], index: 4, kind: input, shape index: {}]
  %s5 = inlined_call_operand.hbm [shape: f32[8,128], index: 5, kind: output, shape index: {}]
  %s6 = sld [smem:[#allocation0]]
  $region38: #{tpu_custom_call.1} parent=0
    _
  %s8 = ssub.s32 1, %s6
  %s9 = scalar_select 0, %s8, %s6
  %10 = sst [smem:[#allocation2]] %s4
  $region1: #{tpu_custom_call.1} parent=0
    #allocation3 [shape = 'u8[32768]{0}', space=vmem, size = 0x8000, scoped, tag = 'input window, operand 0, single buffered']
    #allocation4 [shape = 's32[1]{0}', space=sflag, size = 0x4, scoped, tag = 'scoped memory for tpu_custom_call.1']
    #allocation5 [shape = 's32[1]{0}', space=sflag, size = 0x4, scoped, tag = 'scoped memory for tpu_custom_call.1']
    #allocation6 [shape = 'u8[262144]{0}', space=vmem, size = 0x40000, scoped, tag = 'input window, operand 1, single buffered']
    #allocation7 [shape = 's32[1]{0}', space=sflag, size = 0x4, scoped, tag = 'scoped memory for tpu_custom_call.1']
    #allocation8 [shape = 'u8[4096]{0}', space=vmem, size = 0x1000, scoped, tag = 'output window, operand 0, single buffered']
    %11 = vsyncpa [#allocation4], 0
    %12 = vsyncpa [#allocation7], 0
    %13 = vsyncpa [#allocation5], 0
    // Predicated region
    $region2: #{tpu_custom_call.1} parent=1 // pred_check
      _
    $region3: #{tpu_custom_call.1} parent=1 // pred_check_branch
      %15 = sbr.rel (0) target = $region5
    $region4: #{tpu_custom_call.1} parent=1 // pred_region
      %s17 = ssub.s32 1024, 256
      %18 = vsyncadd [#allocation4], %s17
      %s19 = sshll.u32 [#allocation3], 4
      %s20 = int_to_ptr.vmem [resolvable:$true] %s19
      %25 = dma.hbm_to_vmem [thread:$0]  %s0, 256, %s20, [#allocation4], 256, 256, 16
    $region5: #{tpu_custom_call.1} parent=1 // pred_fallthru
      _
    // Predicated region
    $region6: #{tpu_custom_call.1} parent=1 // pred_check
      _
    $region7: #{tpu_custom_call.1} parent=1 // pred_check_branch
      %27 = sbr.rel (0) target = $region9
    $region8: #{tpu_custom_call.1} parent=1 // pred_region
      %s29 = ssub.s32 8192, 8192
      %30 = vsyncadd [#allocation7], %s29
      %s31 = sshll.u32 [#allocation6], 4
      %s32 = int_to_ptr.vmem [resolvable:$true] %s31
      %37 = dma.hbm_to_vmem [thread:$0]  %s1, 8192, %s32, [#allocation7], 64, 64, 4
    $region9: #{tpu_custom_call.1} parent=1 // pred_fallthru
      _
    // Predicated region
    $region10: #{tpu_custom_call.1} parent=1 // pred_check
      _
    $region11: #{tpu_custom_call.1} parent=1 // pred_check_branch
      %39 = sbr.rel (0) target = $region13
    $region12: #{tpu_custom_call.1} parent=1 // pred_region
      _
    $region13: #{tpu_custom_call.1} parent=1 // pred_fallthru
      _
    // Predicated region
    $region14: #{tpu_custom_call.1} parent=1 // pred_check
      _
    $region15: #{tpu_custom_call.1} parent=1 // pred_check_branch
      %41 = sbr.rel (0) target = $region17
    $region16: #{tpu_custom_call.1} parent=1 // pred_region
      _
    $region17: #{tpu_custom_call.1} parent=1 // pred_fallthru
      _
    // Predicated region
    $region18: #{tpu_custom_call.1} parent=1 // pred_check
      _
    $region19: #{tpu_custom_call.1} parent=1 // pred_check_branch
      %43 = sbr.rel (0) target = $region21
    $region20: #{tpu_custom_call.1} parent=1 // pred_region
      _
    $region21: #{tpu_custom_call.1} parent=1 // pred_fallthru
      _
    // Predicated region
    $region22: #{tpu_custom_call.1} parent=1 // pred_check
      _
    $region23: #{tpu_custom_call.1} parent=1 // pred_check_branch
      %45 = sbr.rel (0) target = $region25
    $region24: #{tpu_custom_call.1} parent=1 // pred_region
      %46 = dma.done [#allocation4], 1024
    $region25: #{tpu_custom_call.1} parent=1 // pred_fallthru
      _
    // Predicated region
    $region26: #{tpu_custom_call.1} parent=1 // pred_check
      _
    $region27: #{tpu_custom_call.1} parent=1 // pred_check_branch
      %48 = sbr.rel (0) target = $region29
    $region28: #{tpu_custom_call.1} parent=1 // pred_region
      %49 = dma.done [#allocation7], 8192
    $region29: #{tpu_custom_call.1} parent=1 // pred_fallthru
      _
    %v51 = vld [vmem:[#allocation3] sm:$0xff]
    %v52 = vld [vmem:[#allocation3 + $0x8] sm:$0xff]
    %v53 = vld [vmem:[#allocation3 + $0x10] sm:$0xff]
    %v54 = vld [vmem:[#allocation3 + $0x18] sm:$0xff]
    %v55 = vld [vmem:[#allocation3 + $0x20] sm:$0xff]
    %v56 = vld [vmem:[#allocation3 + $0x28] sm:$0xff]
    %v57 = vld [vmem:[#allocation3 + $0x30] sm:$0xff]
    %v58 = vld [vmem:[#allocation3 + $0x38] sm:$0xff]
    %v67 = vcombine.low %v51, %v53
    %v68 = vcombine.high %v51, %v53
    %v69 = vcombine.low %v55, %v57
    %v70 = vcombine.high %v55, %v57
    %v72 = vunpack.c.l.s4 1983009808
    %v73 = vunpack.c.0.s8 %v72
    %v74 = vlaneseq
    %v75 = vshrl.u32 %v74, 7
    %v76 = vsub.s32 %v73, %v75
    %v77 = vrot.slane %v67, %v76
    %v79 = vunpack.c.l.s4 1983009808
    %v80 = vunpack.c.0.s8 %v79
    %v81 = vlaneseq
    %v82 = vshrl.u32 %v81, 7
    %v83 = vsub.s32 %v80, %v82
    %v84 = vrot.slane %v68, %v83
    %v86 = vunpack.c.l.s4 1983009808
    %v87 = vunpack.c.0.s8 %v86
    %v88 = vlaneseq
    %v89 = vshrl.u32 %v88, 7
    %v90 = vsub.s32 %v87, %v89
    %v91 = vrot.slane %v69, %v90
    %v93 = vunpack.c.l.s4 1983009808
    %v94 = vunpack.c.0.s8 %v93
    %v95 = vlaneseq
    %v96 = vshrl.u32 %v95, 7
    %v97 = vsub.s32 %v94, %v96
    %v98 = vrot.slane %v70, %v97
    %v99 = vcombine.low %v77, %v91
    %v100 = vcombine.high %v77, %v91
    %v101 = vcombine.low %v84, %v98
    %v102 = vcombine.high %v84, %v98
    %v103 = vcombine.low %v52, %v54
    %v104 = vcombine.high %v52, %v54
    %v105 = vcombine.low %v56, %v58
    %v106 = vcombine.high %v56, %v58
    %v108 = vunpack.c.l.s4 1983009808
    %v109 = vunpack.c.0.s8 %v108
    %v110 = vlaneseq
    %v111 = vshrl.u32 %v110, 7
    %v112 = vsub.s32 %v109, %v111
    %v113 = vrot.slane %v103, %v112
    %v115 = vunpack.c.l.s4 1983009808
    %v116 = vunpack.c.0.s8 %v115
    %v117 = vlaneseq
    %v118 = vshrl.u32 %v117, 7
    %v119 = vsub.s32 %v116, %v118
    %v120 = vrot.slane %v104, %v119
    %v122 = vunpack.c.l.s4 1983009808
    %v123 = vunpack.c.0.s8 %v122
    %v124 = vlaneseq
    %v125 = vshrl.u32 %v124, 7
    %v126 = vsub.s32 %v123, %v125
    %v127 = vrot.slane %v105, %v126
    %v129 = vunpack.c.l.s4 1983009808
    %v130 = vunpack.c.0.s8 %v129
    %v131 = vlaneseq
    %v132 = vshrl.u32 %v131, 7
    %v133 = vsub.s32 %v130, %v132
    %v134 = vrot.slane %v106, %v133
    %v135 = vcombine.low %v113, %v127
    %v136 = vcombine.high %v113, %v127
    %v137 = vcombine.low %v120, %v134
    %v138 = vcombine.high %v120, %v134
    %v147 = vpack.c.bf16 %v99, %v99
    %v148 = vpack.c.bf16 %v100, %v100
    %v149 = vpack.c.bf16 %v101, %v101
    %v150 = vpack.c.bf16 %v102, %v102
    %v151 = vpack.c.bf16 %v135, %v135
    %v152 = vpack.c.bf16 %v136, %v136
    %v153 = vpack.c.bf16 %v137, %v137
    %v154 = vpack.c.bf16 %v138, %v138
    %v155 = vld [vmem:[#allocation6] sm:$0xf]
    %v156 = vld [vmem:[#allocation6 + $0x4] sm:$0xf]
    %v157 = vld [vmem:[#allocation6 + $0x8] sm:$0xf]
    %v158 = vld [vmem:[#allocation6 + $0xc] sm:$0xf]
    %v159 = vld [vmem:[#allocation6 + $0x10] sm:$0xf]
    %v160 = vld [vmem:[#allocation6 + $0x14] sm:$0xf]
    %v161 = vld [vmem:[#allocation6 + $0x18] sm:$0xf]
    %v162 = vld [vmem:[#allocation6 + $0x1c] sm:$0xf]
    %v163 = vld [vmem:[#allocation6 + $0x20] sm:$0xf]
    %v164 = vld [vmem:[#allocation6 + $0x24] sm:$0xf]
    %v165 = vld [vmem:[#allocation6 + $0x28] sm:$0xf]
    %v166 = vld [vmem:[#allocation6 + $0x2c] sm:$0xf]
    %v167 = vld [vmem:[#allocation6 + $0x30] sm:$0xf]
    %v168 = vld [vmem:[#allocation6 + $0x34] sm:$0xf]
    %v169 = vld [vmem:[#allocation6 + $0x38] sm:$0xf]
    %v170 = vld [vmem:[#allocation6 + $0x3c] sm:$0xf]
    %v171 = vld [vmem:[#allocation6 + $0x40] sm:$0xf]
    %v172 = vld [vmem:[#allocation6 + $0x44] sm:$0xf]
    %v173 = vld [vmem:[#allocation6 + $0x48] sm:$0xf]
    %v174 = vld [vmem:[#allocation6 + $0x4c] sm:$0xf]
    %v175 = vld [vmem:[#allocation6 + $0x50] sm:$0xf]
    %v176 = vld [vmem:[#allocation6 + $0x54] sm:$0xf]
    %v177 = vld [vmem:[#allocation6 + $0x58] sm:$0xf]
    %v178 = vld [vmem:[#allocation6 + $0x5c] sm:$0xf]
    %v179 = vld [vmem:[#allocation6 + $0x60] sm:$0xf]
    %v180 = vld [vmem:[#allocation6 + $0x64] sm:$0xf]
    %v181 = vld [vmem:[#allocation6 + $0x68] sm:$0xf]
    %v182 = vld [vmem:[#allocation6 + $0x6c] sm:$0xf]
    %v183 = vld [vmem:[#allocation6 + $0x70] sm:$0xf]
    %v184 = vld [vmem:[#allocation6 + $0x74] sm:$0xf]
    %v185 = vld [vmem:[#allocation6 + $0x78] sm:$0xf]
    %v186 = vld [vmem:[#allocation6 + $0x7c] sm:$0xf]
    %v187 = vld [vmem:[#allocation6 + $0x80] sm:$0xf]
    %v188 = vld [vmem:[#allocation6 + $0x84] sm:$0xf]
    %v189 = vld [vmem:[#allocation6 + $0x88] sm:$0xf]
    %v190 = vld [vmem:[#allocation6 + $0x8c] sm:$0xf]
    %v191 = vld [vmem:[#allocation6 + $0x90] sm:$0xf]
    %v192 = vld [vmem:[#allocation6 + $0x94] sm:$0xf]
    %v193 = vld [vmem:[#allocation6 + $0x98] sm:$0xf]
    %v194 = vld [vmem:[#allocation6 + $0x9c] sm:$0xf]
    %v195 = vld [vmem:[#allocation6 + $0xa0] sm:$0xf]
    %v196 = vld [vmem:[#allocation6 + $0xa4] sm:$0xf]
    %v197 = vld [vmem:[#allocation6 + $0xa8] sm:$0xf]
    %v198 = vld [vmem:[#allocation6 + $0xac] sm:$0xf]
    %v199 = vld [vmem:[#allocation6 + $0xb0] sm:$0xf]
    %v200 = vld [vmem:[#allocation6 + $0xb4] sm:$0xf]
    %v201 = vld [vmem:[#allocation6 + $0xb8] sm:$0xf]
    %v202 = vld [vmem:[#allocation6 + $0xbc] sm:$0xf]
    %v203 = vld [vmem:[#allocation6 + $0xc0] sm:$0xf]
    %v204 = vld [vmem:[#allocation6 + $0xc4] sm:$0xf]
    %v205 = vld [vmem:[#allocation6 + $0xc8] sm:$0xf]
    %v206 = vld [vmem:[#allocation6 + $0xcc] sm:$0xf]
    %v207 = vld [vmem:[#allocation6 + $0xd0] sm:$0xf]
    %v208 = vld [vmem:[#allocation6 + $0xd4] sm:$0xf]
    %v209 = vld [vmem:[#allocation6 + $0xd8] sm:$0xf]
    %v210 = vld [vmem:[#allocation6 + $0xdc] sm:$0xf]
    %v211 = vld [vmem:[#allocation6 + $0xe0] sm:$0xf]
    %v212 = vld [vmem:[#allocation6 + $0xe4] sm:$0xf]
    %v213 = vld [vmem:[#allocation6 + $0xe8] sm:$0xf]
    %v214 = vld [vmem:[#allocation6 + $0xec] sm:$0xf]
    %v215 = vld [vmem:[#allocation6 + $0xf0] sm:$0xf]
    %v216 = vld [vmem:[#allocation6 + $0xf4] sm:$0xf]
    %v217 = vld [vmem:[#allocation6 + $0xf8] sm:$0xf]
    %v218 = vld [vmem:[#allocation6 + $0xfc] sm:$0xf]
    %v219 = vld [vmem:[#allocation6 + $0x100] sm:$0xf]
    %v220 = vld [vmem:[#allocation6 + $0x104] sm:$0xf]
    %v221 = vld [vmem:[#allocation6 + $0x108] sm:$0xf]
    %v222 = vld [vmem:[#allocation6 + $0x10c] sm:$0xf]
    %v223 = vld [vmem:[#allocation6 + $0x110] sm:$0xf]
    %v224 = vld [vmem:[#allocation6 + $0x114] sm:$0xf]
    %v225 = vld [vmem:[#allocation6 + $0x118] sm:$0xf]
    %v226 = vld [vmem:[#allocation6 + $0x11c] sm:$0xf]
    %v227 = vld [vmem:[#allocation6 + $0x120] sm:$0xf]
    %v228 = vld [vmem:[#allocation6 + $0x124] sm:$0xf]
    %v229 = vld [vmem:[#allocation6 + $0x128] sm:$0xf]
    %v230 = vld [vmem:[#allocation6 + $0x12c] sm:$0xf]
    %v231 = vld [vmem:[#allocation6 + $0x130] sm:$0xf]
    %v232 = vld [vmem:[#allocation6 + $0x134] sm:$0xf]
    %v233 = vld [vmem:[#allocation6 + $0x138] sm:$0xf]
    %v234 = vld [vmem:[#allocation6 + $0x13c] sm:$0xf]
    %v235 = vld [vmem:[#allocation6 + $0x140] sm:$0xf]
    %v236 = vld [vmem:[#allocation6 + $0x144] sm:$0xf]
    %v237 = vld [vmem:[#allocation6 + $0x148] sm:$0xf]
    %v238 = vld [vmem:[#allocation6 + $0x14c] sm:$0xf]
    %v239 = vld [vmem:[#allocation6 + $0x150] sm:$0xf]
    %v240 = vld [vmem:[#allocation6 + $0x154] sm:$0xf]
    %v241 = vld [vmem:[#allocation6 + $0x158] sm:$0xf]
    %v242 = vld [vmem:[#allocation6 + $0x15c] sm:$0xf]
    %v243 = vld [vmem:[#allocation6 + $0x160] sm:$0xf]
    %v244 = vld [vmem:[#allocation6 + $0x164] sm:$0xf]
    %v245 = vld [vmem:[#allocation6 + $0x168] sm:$0xf]
    %v246 = vld [vmem:[#allocation6 + $0x16c] sm:$0xf]
    %v247 = vld [vmem:[#allocation6 + $0x170] sm:$0xf]
    %v248 = vld [vmem:[#allocation6 + $0x174] sm:$0xf]
    %v249 = vld [vmem:[#allocation6 + $0x178] sm:$0xf]
    %v250 = vld [vmem:[#allocation6 + $0x17c] sm:$0xf]
    %v251 = vld [vmem:[#allocation6 + $0x180] sm:$0xf]
    %v252 = vld [vmem:[#allocation6 + $0x184] sm:$0xf]
    %v253 = vld [vmem:[#allocation6 + $0x188] sm:$0xf]
    %v254 = vld [vmem:[#allocation6 + $0x18c] sm:$0xf]
    %v255 = vld [vmem:[#allocation6 + $0x190] sm:$0xf]
    %v256 = vld [vmem:[#allocation6 + $0x194] sm:$0xf]
    %v257 = vld [vmem:[#allocation6 + $0x198] sm:$0xf]
    %v258 = vld [vmem:[#allocation6 + $0x19c] sm:$0xf]
    %v259 = vld [vmem:[#allocation6 + $0x1a0] sm:$0xf]
    %v260 = vld [vmem:[#allocation6 + $0x1a4] sm:$0xf]
    %v261 = vld [vmem:[#allocation6 + $0x1a8] sm:$0xf]
    %v262 = vld [vmem:[#allocation6 + $0x1ac] sm:$0xf]
    %v263 = vld [vmem:[#allocation6 + $0x1b0] sm:$0xf]
    %v264 = vld [vmem:[#allocation6 + $0x1b4] sm:$0xf]
    %v265 = vld [vmem:[#allocation6 + $0x1b8] sm:$0xf]
    %v266 = vld [vmem:[#allocation6 + $0x1bc] sm:$0xf]
    %v267 = vld [vmem:[#allocation6 + $0x1c0] sm:$0xf]
    %v268 = vld [vmem:[#allocation6 + $0x1c4] sm:$0xf]
    %v269 = vld [vmem:[#allocation6 + $0x1c8] sm:$0xf]
    %v270 = vld [vmem:[#allocation6 + $0x1cc] sm:$0xf]
    %v271 = vld [vmem:[#allocation6 + $0x1d0] sm:$0xf]
    %v272 = vld [vmem:[#allocation6 + $0x1d4] sm:$0xf]
    %v273 = vld [vmem:[#allocation6 + $0x1d8] sm:$0xf]
    %v274 = vld [vmem:[#allocation6 + $0x1dc] sm:$0xf]
    %v275 = vld [vmem:[#allocation6 + $0x1e0] sm:$0xf]
    %v276 = vld [vmem:[#allocation6 + $0x1e4] sm:$0xf]
    %v277 = vld [vmem:[#allocation6 + $0x1e8] sm:$0xf]
    %v278 = vld [vmem:[#allocation6 + $0x1ec] sm:$0xf]
    %v279 = vld [vmem:[#allocation6 + $0x1f0] sm:$0xf]
    %v280 = vld [vmem:[#allocation6 + $0x1f4] sm:$0xf]
    %v281 = vld [vmem:[#allocation6 + $0x1f8] sm:$0xf]
    %v282 = vld [vmem:[#allocation6 + $0x1fc] sm:$0xf]
    %v283 = vld [vmem:[%s2] sm:$0x1]
    %v285 = vlaneseq
    %v286 = vshrl.u32 %v285, 7
    %v287 = vsub.s32 0, %v286
    %v288 = vrot.slane %v283, %v287
    %v418 = vunpack.c.l.b16 %v155
    %v419 = vunpack.c.l.b16 %v156
    %v420 = vunpack.c.l.b16 %v157
    %v421 = vunpack.c.l.b16 %v158
    %v422 = vunpack.c.l.b16 %v159
    %v423 = vunpack.c.l.b16 %v160
    %v424 = vunpack.c.l.b16 %v161
    %v425 = vunpack.c.l.b16 %v162
    %v426 = vunpack.c.l.b16 %v163
    %v427 = vunpack.c.l.b16 %v164
    %v428 = vunpack.c.l.b16 %v165
    %v429 = vunpack.c.l.b16 %v166
    %v430 = vunpack.c.l.b16 %v167
    %v431 = vunpack.c.l.b16 %v168
    %v432 = vunpack.c.l.b16 %v169
    %v433 = vunpack.c.l.b16 %v170
    %v434 = vunpack.c.l.b16 %v171
    %v435 = vunpack.c.l.b16 %v172
    %v436 = vunpack.c.l.b16 %v173
    %v437 = vunpack.c.l.b16 %v174
    %v438 = vunpack.c.l.b16 %v175
    %v439 = vunpack.c.l.b16 %v176
    %v440 = vunpack.c.l.b16 %v177
    %v441 = vunpack.c.l.b16 %v178
    %v442 = vunpack.c.l.b16 %v179
    %v443 = vunpack.c.l.b16 %v180
    %v444 = vunpack.c.l.b16 %v181
    %v445 = vunpack.c.l.b16 %v182
    %v446 = vunpack.c.l.b16 %v183
    %v447 = vunpack.c.l.b16 %v184
    %v448 = vunpack.c.l.b16 %v185
    %v449 = vunpack.c.l.b16 %v186
    %v450 = vunpack.c.l.b16 %v187
    %v451 = vunpack.c.l.b16 %v188
    %v452 = vunpack.c.l.b16 %v189
    %v453 = vunpack.c.l.b16 %v190
    %v454 = vunpack.c.l.b16 %v191
    %v455 = vunpack.c.l.b16 %v192
    %v456 = vunpack.c.l.b16 %v193
    %v457 = vunpack.c.l.b16 %v194
    %v458 = vunpack.c.l.b16 %v195
    %v459 = vunpack.c.l.b16 %v196
    %v460 = vunpack.c.l.b16 %v197
    %v461 = vunpack.c.l.b16 %v198
    %v462 = vunpack.c.l.b16 %v199
    %v463 = vunpack.c.l.b16 %v200
    %v464 = vunpack.c.l.b16 %v201
    %v465 = vunpack.c.l.b16 %v202
    %v466 = vunpack.c.l.b16 %v203
    %v467 = vunpack.c.l.b16 %v204
    %v468 = vunpack.c.l.b16 %v205
    %v469 = vunpack.c.l.b16 %v206
    %v470 = vunpack.c.l.b16 %v207
    %v471 = vunpack.c.l.b16 %v208
    %v472 = vunpack.c.l.b16 %v209
    %v473 = vunpack.c.l.b16 %v210
    %v474 = vunpack.c.l.b16 %v211
    %v475 = vunpack.c.l.b16 %v212
    %v476 = vunpack.c.l.b16 %v213
    %v477 = vunpack.c.l.b16 %v214
    %v478 = vunpack.c.l.b16 %v215
    %v479 = vunpack.c.l.b16 %v216
    %v480 = vunpack.c.l.b16 %v217
    %v481 = vunpack.c.l.b16 %v218
    %v482 = vunpack.c.l.b16 %v219
    %v483 = vunpack.c.l.b16 %v220
    %v484 = vunpack.c.l.b16 %v221
    %v485 = vunpack.c.l.b16 %v222
    %v486 = vunpack.c.l.b16 %v223
    %v487 = vunpack.c.l.b16 %v224
    %v488 = vunpack.c.l.b16 %v225
    %v489 = vunpack.c.l.b16 %v226
    %v490 = vunpack.c.l.b16 %v227
    %v491 = vunpack.c.l.b16 %v228
    %v492 = vunpack.c.l.b16 %v229
    %v493 = vunpack.c.l.b16 %v230
    %v494 = vunpack.c.l.b16 %v231
    %v495 = vunpack.c.l.b16 %v232
    %v496 = vunpack.c.l.b16 %v233
    %v497 = vunpack.c.l.b16 %v234
    %v498 = vunpack.c.l.b16 %v235
    %v499 = vunpack.c.l.b16 %v236
    %v500 = vunpack.c.l.b16 %v237
    %v501 = vunpack.c.l.b16 %v238
    %v502 = vunpack.c.l.b16 %v239
    %v503 = vunpack.c.l.b16 %v240
    %v504 = vunpack.c.l.b16 %v241
    %v505 = vunpack.c.l.b16 %v242
    %v506 = vunpack.c.l.b16 %v243
    %v507 = vunpack.c.l.b16 %v244
    %v508 = vunpack.c.l.b16 %v245
    %v509 = vunpack.c.l.b16 %v246
    %v510 = vunpack.c.l.b16 %v247
    %v511 = vunpack.c.l.b16 %v248
    %v512 = vunpack.c.l.b16 %v249
    %v513 = vunpack.c.l.b16 %v250
    %v514 = vunpack.c.l.b16 %v251
    %v515 = vunpack.c.l.b16 %v252
    %v516 = vunpack.c.l.b16 %v253
    %v517 = vunpack.c.l.b16 %v254
    %v518 = vunpack.c.l.b16 %v255
    %v519 = vunpack.c.l.b16 %v256
    %v520 = vunpack.c.l.b16 %v257
    %v521 = vunpack.c.l.b16 %v258
    %v522 = vunpack.c.l.b16 %v259
    %v523 = vunpack.c.l.b16 %v260
    %v524 = vunpack.c.l.b16 %v261
    %v525 = vunpack.c.l.b16 %v262
    %v526 = vunpack.c.l.b16 %v263
    %v527 = vunpack.c.l.b16 %v264
    %v528 = vunpack.c.l.b16 %v265
    %v529 = vunpack.c.l.b16 %v266
    %v530 = vunpack.c.l.b16 %v267
    %v531 = vunpack.c.l.b16 %v268
    %v532 = vunpack.c.l.b16 %v269
    %v533 = vunpack.c.l.b16 %v270
    %v534 = vunpack.c.l.b16 %v271
    %v535 = vunpack.c.l.b16 %v272
    %v536 = vunpack.c.l.b16 %v273
    %v537 = vunpack.c.l.b16 %v274
    %v538 = vunpack.c.l.b16 %v275
    %v539 = vunpack.c.l.b16 %v276
    %v540 = vunpack.c.l.b16 %v277
    %v541 = vunpack.c.l.b16 %v278
    %v542 = vunpack.c.l.b16 %v279
    %v543 = vunpack.c.l.b16 %v280
    %v544 = vunpack.c.l.b16 %v281
    %v545 = vunpack.c.l.b16 %v282
    %v546 = vpack.c.b16 %v419, %v418
    %v547 = vpack.c.b16 %v421, %v420
    %v548 = vpack.c.b16 %v423, %v422
    %v549 = vpack.c.b16 %v425, %v424
    %v550 = vpack.c.b16 %v427, %v426
    %v551 = vpack.c.b16 %v429, %v428
    %v552 = vpack.c.b16 %v431, %v430
    %v553 = vpack.c.b16 %v433, %v432
    %v554 = vpack.c.b16 %v435, %v434
    %v555 = vpack.c.b16 %v437, %v436
    %v556 = vpack.c.b16 %v439, %v438
    %v557 = vpack.c.b16 %v441, %v440
    %v558 = vpack.c.b16 %v443, %v442
    %v559 = vpack.c.b16 %v445, %v444
    %v560 = vpack.c.b16 %v447, %v446
    %v561 = vpack.c.b16 %v449, %v448
    %v562 = vpack.c.b16 %v451, %v450
    %v563 = vpack.c.b16 %v453, %v452
    %v564 = vpack.c.b16 %v455, %v454
    %v565 = vpack.c.b16 %v457, %v456
    %v566 = vpack.c.b16 %v459, %v458
    %v567 = vpack.c.b16 %v461, %v460
    %v568 = vpack.c.b16 %v463, %v462
    %v569 = vpack.c.b16 %v465, %v464
    %v570 = vpack.c.b16 %v467, %v466
    %v571 = vpack.c.b16 %v469, %v468
    %v572 = vpack.c.b16 %v471, %v470
    %v573 = vpack.c.b16 %v473, %v472
    %v574 = vpack.c.b16 %v475, %v474
    %v575 = vpack.c.b16 %v477, %v476
    %v576 = vpack.c.b16 %v479, %v478
    %v577 = vpack.c.b16 %v481, %v480
    %v578 = vpack.c.b16 %v483, %v482
    %v579 = vpack.c.b16 %v485, %v484
    %v580 = vpack.c.b16 %v487, %v486
    %v581 = vpack.c.b16 %v489, %v488
    %v582 = vpack.c.b16 %v491, %v490
    %v583 = vpack.c.b16 %v493, %v492
    %v584 = vpack.c.b16 %v495, %v494
    %v585 = vpack.c.b16 %v497, %v496
    %v586 = vpack.c.b16 %v499, %v498
    %v587 = vpack.c.b16 %v501, %v500
    %v588 = vpack.c.b16 %v503, %v502
    %v589 = vpack.c.b16 %v505, %v504
    %v590 = vpack.c.b16 %v507, %v506
    %v591 = vpack.c.b16 %v509, %v508
    %v592 = vpack.c.b16 %v511, %v510
    %v593 = vpack.c.b16 %v513, %v512
    %v594 = vpack.c.b16 %v515, %v514
    %v595 = vpack.c.b16 %v517, %v516
    %v596 = vpack.c.b16 %v519, %v518
    %v597 = vpack.c.b16 %v521, %v520
    %v598 = vpack.c.b16 %v523, %v522
    %v599 = vpack.c.b16 %v525, %v524
    %v600 = vpack.c.b16 %v527, %v526
    %v601 = vpack.c.b16 %v529, %v528
    %v602 = vpack.c.b16 %v531, %v530
    %v603 = vpack.c.b16 %v533, %v532
    %v604 = vpack.c.b16 %v535, %v534
    %v605 = vpack.c.b16 %v537, %v536
    %v606 = vpack.c.b16 %v539, %v538
    %v607 = vpack.c.b16 %v541, %v540
    %v608 = vpack.c.b16 %v543, %v542
    %v609 = vpack.c.b16 %v545, %v544
    %674 = vmatprep.subr.bf16.mxu0 0
    %675 = vmatpush1.bf16.msra.mxu0 %v546
    %676 = vmatprep.subr.bf16.mxu0 0
    %677 = vmatpush1.bf16.msra.mxu0 %v547
    %678 = vmatprep.subr.bf16.mxu0 0
    %679 = vmatpush1.bf16.msra.mxu0 %v548
    %680 = vmatprep.subr.bf16.mxu0 0
    %681 = vmatpush1.bf16.msra.mxu0 %v549
    %682 = vmatprep.subr.bf16.mxu0 0
    %683 = vmatpush1.bf16.msra.mxu0 %v550
    %684 = vmatprep.subr.bf16.mxu0 0
    %685 = vmatpush1.bf16.msra.mxu0 %v551
    %686 = vmatprep.subr.bf16.mxu0 0
    %687 = vmatpush1.bf16.msra.mxu0 %v552
    %688 = vmatprep.subr.bf16.mxu0 0
    %689 = vmatpush1.bf16.msra.mxu0 %v553
    %690 = vmatprep.subr.bf16.mxu0 0
    %691 = vmatpush1.bf16.msra.mxu0 %v554
    %692 = vmatprep.subr.bf16.mxu0 0
    %693 = vmatpush1.bf16.msra.mxu0 %v555
    %694 = vmatprep.subr.bf16.mxu0 0
    %695 = vmatpush1.bf16.msra.mxu0 %v556
    %696 = vmatprep.subr.bf16.mxu0 0
    %697 = vmatpush1.bf16.msra.mxu0 %v557
    %698 = vmatprep.subr.bf16.mxu0 0
    %699 = vmatpush1.bf16.msra.mxu0 %v558
    %700 = vmatprep.subr.bf16.mxu0 0
    %701 = vmatpush1.bf16.msra.mxu0 %v559
    %702 = vmatprep.subr.bf16.mxu0 0
    %703 = vmatpush1.bf16.msra.mxu0 %v560
    %704 = vmatprep.subr.bf16.mxu0 0
    %705 = vmatpush1.bf16.msra.mxu0 %v561
    %706 = vmatprep.mubr.bf16.mxu0 %v148
    %707 = vmatmul.mubr.bf16.gmra.mrb[0].mxu0 %v147
    %v708 = vpop.f32.mrb[0].mxu0
    %v709 = vadd.f32 %v288, %v708
    %v710 = vpop.f32.mrb[0].mxu0
    %v711 = vpop.f32.mrb[0].mxu0
    %v712 = vpop.f32.mrb[0].mxu0
    %713 = vdwg.mxu0
    %714 = vmatprep.subr.bf16.mxu0 0
    %715 = vmatpush1.bf16.msra.mxu0 %v562
    %716 = vmatprep.subr.bf16.mxu0 0
    %717 = vmatpush1.bf16.msra.mxu0 %v563
    %718 = vmatprep.subr.bf16.mxu0 0
    %719 = vmatpush1.bf16.msra.mxu0 %v564
    %720 = vmatprep.subr.bf16.mxu0 0
    %721 = vmatpush1.bf16.msra.mxu0 %v565
    %722 = vmatprep.subr.bf16.mxu0 0
    %723 = vmatpush1.bf16.msra.mxu0 %v566
    %724 = vmatprep.subr.bf16.mxu0 0
    %725 = vmatpush1.bf16.msra.mxu0 %v567
    %726 = vmatprep.subr.bf16.mxu0 0
    %727 = vmatpush1.bf16.msra.mxu0 %v568
    %728 = vmatprep.subr.bf16.mxu0 0
    %729 = vmatpush1.bf16.msra.mxu0 %v569
    %730 = vmatprep.subr.bf16.mxu0 0
    %731 = vmatpush1.bf16.msra.mxu0 %v570
    %732 = vmatprep.subr.bf16.mxu0 0
    %733 = vmatpush1.bf16.msra.mxu0 %v571
    %734 = vmatprep.subr.bf16.mxu0 0
    %735 = vmatpush1.bf16.msra.mxu0 %v572
    %736 = vmatprep.subr.bf16.mxu0 0
    %737 = vmatpush1.bf16.msra.mxu0 %v573
    %738 = vmatprep.subr.bf16.mxu0 0
    %739 = vmatpush1.bf16.msra.mxu0 %v574
    %740 = vmatprep.subr.bf16.mxu0 0
    %741 = vmatpush1.bf16.msra.mxu0 %v575
    %742 = vmatprep.subr.bf16.mxu0 0
    %743 = vmatpush1.bf16.msra.mxu0 %v576
    %744 = vmatprep.subr.bf16.mxu0 0
    %745 = vmatpush1.bf16.msra.mxu0 %v577
    %746 = vmatprep.mubr.bf16.mxu0 %v150
    %747 = vmatmul.mubr.bf16.gmra.mrb[0].mxu0 %v149
    %v748 = vpop.f32.mrb[0].mxu0
    %v749 = vadd.f32 %v709, %v748
    %v750 = vpop.f32.mrb[0].mxu0
    %v751 = vpop.f32.mrb[0].mxu0
    %v752 = vpop.f32.mrb[0].mxu0
    %753 = vdwg.mxu0
    %754 = vmatprep.subr.bf16.mxu0 0
    %755 = vmatpush1.bf16.msra.mxu0 %v578
    %756 = vmatprep.subr.bf16.mxu0 0
    %757 = vmatpush1.bf16.msra.mxu0 %v579
    %758 = vmatprep.subr.bf16.mxu0 0
    %759 = vmatpush1.bf16.msra.mxu0 %v580
    %760 = vmatprep.subr.bf16.mxu0 0
    %761 = vmatpush1.bf16.msra.mxu0 %v581
    %762 = vmatprep.subr.bf16.mxu0 0
    %763 = vmatpush1.bf16.msra.mxu0 %v582
    %764 = vmatprep.subr.bf16.mxu0 0
    %765 = vmatpush1.bf16.msra.mxu0 %v583
    %766 = vmatprep.subr.bf16.mxu0 0
    %767 = vmatpush1.bf16.msra.mxu0 %v584
    %768 = vmatprep.subr.bf16.mxu0 0
    %769 = vmatpush1.bf16.msra.mxu0 %v585
    %770 = vmatprep.subr.bf16.mxu0 0
    %771 = vmatpush1.bf16.msra.mxu0 %v586
    %772 = vmatprep.subr.bf16.mxu0 0
    %773 = vmatpush1.bf16.msra.mxu0 %v587
    %774 = vmatprep.subr.bf16.mxu0 0
    %775 = vmatpush1.bf16.msra.mxu0 %v588
    %776 = vmatprep.subr.bf16.mxu0 0
    %777 = vmatpush1.bf16.msra.mxu0 %v589
    %778 = vmatprep.subr.bf16.mxu0 0
    %779 = vmatpush1.bf16.msra.mxu0 %v590
    %780 = vmatprep.subr.bf16.mxu0 0
    %781 = vmatpush1.bf16.msra.mxu0 %v591
    %782 = vmatprep.subr.bf16.mxu0 0
    %783 = vmatpush1.bf16.msra.mxu0 %v592
    %784 = vmatprep.subr.bf16.mxu0 0
    %785 = vmatpush1.bf16.msra.mxu0 %v593
    %786 = vmatprep.mubr.bf16.mxu0 %v152
    %787 = vmatmul.mubr.bf16.gmra.mrb[0].mxu0 %v151
    %v788 = vpop.f32.mrb[0].mxu0
    %v789 = vadd.f32 %v749, %v788
    %v790 = vpop.f32.mrb[0].mxu0
    %v791 = vpop.f32.mrb[0].mxu0
    %v792 = vpop.f32.mrb[0].mxu0
    %793 = vdwg.mxu0
    %794 = vmatprep.subr.bf16.mxu0 0
    %795 = vmatpush1.bf16.msra.mxu0 %v594
    %796 = vmatprep.subr.bf16.mxu0 0
    %797 = vmatpush1.bf16.msra.mxu0 %v595
    %798 = vmatprep.subr.bf16.mxu0 0
    %799 = vmatpush1.bf16.msra.mxu0 %v596
    %800 = vmatprep.subr.bf16.mxu0 0
    %801 = vmatpush1.bf16.msra.mxu0 %v597
    %802 = vmatprep.subr.bf16.mxu0 0
    %803 = vmatpush1.bf16.msra.mxu0 %v598
    %804 = vmatprep.subr.bf16.mxu0 0
    %805 = vmatpush1.bf16.msra.mxu0 %v599
    %806 = vmatprep.subr.bf16.mxu0 0
    %807 = vmatpush1.bf16.msra.mxu0 %v600
    %808 = vmatprep.subr.bf16.mxu0 0
    %809 = vmatpush1.bf16.msra.mxu0 %v601
    %810 = vmatprep.subr.bf16.mxu0 0
    %811 = vmatpush1.bf16.msra.mxu0 %v602
    %812 = vmatprep.subr.bf16.mxu0 0
    %813 = vmatpush1.bf16.msra.mxu0 %v603
    %814 = vmatprep.subr.bf16.mxu0 0
    %815 = vmatpush1.bf16.msra.mxu0 %v604
    %816 = vmatprep.subr.bf16.mxu0 0
    %817 = vmatpush1.bf16.msra.mxu0 %v605
    %818 = vmatprep.subr.bf16.mxu0 0
    %819 = vmatpush1.bf16.msra.mxu0 %v606
    %820 = vmatprep.subr.bf16.mxu0 0
    %821 = vmatpush1.bf16.msra.mxu0 %v607
    %822 = vmatprep.subr.bf16.mxu0 0
    %823 = vmatpush1.bf16.msra.mxu0 %v608
    %824 = vmatprep.subr.bf16.mxu0 0
    %825 = vmatpush1.bf16.msra.mxu0 %v609
    %826 = vmatprep.mubr.bf16.mxu0 %v154
    %827 = vmatmul.mubr.bf16.gmra.mrb[0].mxu0 %v153
    %v828 = vpop.f32.mrb[0].mxu0
    %v829 = vadd.f32 %v789, %v828
    %v830 = vpop.f32.mrb[0].mxu0
    %v831 = vpop.f32.mrb[0].mxu0
    %v832 = vpop.f32.mrb[0].mxu0
    %833 = vdwg.mxu0
    %vm834 = vcmp.gt.f32.partialorder %v829, 0.0
    %v835 = vmul.f32 %v829, 0.2
    %v836 = vsel %vm834, %v829, %v835
    %v837 = vld [vmem:[%s3] sm:$0x1]
    %v839 = vlaneseq
    %v840 = vshrl.u32 %v839, 7
    %v841 = vsub.s32 0, %v840
    %v842 = vrot.slane %v837, %v841
    %v844 = vmul.f32 %v836, %v842
    %845 = vadd.xlane.f32.xlu0 %v844
    %v846 = vpop.xlane.xlu0 %845
    %s847 = sld [smem:[#allocation2]]
    %v848 = vstv %s847
    %v849 = vadd.f32 %v846, %v848
    %v850 = vsub.f32 0.0, %v849
    %v851 = vmax.f32 %v850, 0.0
    %v852 = vand.u32 2147483647, %v849
    %v853 = vsub.f32 0.0, %v852
    %v854 = vmul.f32 %v853, 1.442695
    %v855 = vpow.pop %v854
    %v856 = vadd.f32 %v855, 1.0
    %v857 = vlog2.pop %v856
    %v858 = vmul.f32 %v857, 0.6931472
    %v859 = vmul.f32 -0.5, %v855
    %v860 = vadd.f32 %v859, 1.0
    %v861 = vmul.f32 %v860, %v855
    %v862 = vand.u32 2147483647, %v855
    %vm863 = vcmp.lt.f32.partialorder %v862, 0.0004427343
    %v864 = vsel %vm863, %v861, %v858
    %v865 = vadd.f32 %v851, %v864
    %v866 = vlaneseq
    %v867 = vshrl.u32 %v866, 7
    %s868 = smul.u32 0, 8
    %v869 = vstv %s868
    %v870 = vadd.s32 %v867, %v869
    %vm871 = vcmp.lt.s32.totalorder %v870, 2
    %v872 = vsel %vm871, %v865, 0.0
    %v873 = vrot.slane %v872, 4
    %v874 = vadd.f32 %v872, %v873
    %v875 = vrot.slane %v874, 2
    %v876 = vadd.f32 %v874, %v875
    %v877 = vrot.slane %v876, 1
    %v878 = vadd.f32 %v876, %v877
    %879 = vst [vmem:[#allocation8] sm:$0xff] %v878
    // Predicated region
    $region30: #{tpu_custom_call.1} parent=1 // pred_check
      _
    $region31: #{tpu_custom_call.1} parent=1 // pred_check_branch
      %881 = sbr.rel (0) target = $region33
    $region32: #{tpu_custom_call.1} parent=1 // pred_region
      %s883 = ssub.s32 128, 128
      %884 = vsyncadd [#allocation5], %s883
      %s886 = sshll.u32 [#allocation8], 4
      %s887 = int_to_ptr.vmem [resolvable:$true] %s886
      %889 = dma.vmem_to_hbm [thread:$0]  %s887, 128, %s5, [#allocation5]
    $region33: #{tpu_custom_call.1} parent=1 // pred_fallthru
      _
    // Predicated region
    $region34: #{tpu_custom_call.1} parent=1 // pred_check
      _
    $region35: #{tpu_custom_call.1} parent=1 // pred_check_branch
      %891 = sbr.rel (0) target = $region37
    $region36: #{tpu_custom_call.1} parent=1 // pred_region
      %892 = dma.done [#allocation5], 128
    $region37: #{tpu_custom_call.1} parent=1 // pred_fallthru
      _
    %893 = vsyncpa [#allocation4], 1
    %894 = vsyncpa [#allocation7], 1
    %895 = vsyncpa [#allocation5], 1

</llo_original>
